<compile_context>
chip_gen: v6e
topology: v6e:2x2x1
jax: 0.10.0
libtpu: 0.0.40
codegen_flags: <defaults>
</compile_context>

<pallas_src>
import jax
import jax.numpy as jnp
import numpy as np
from jax.experimental import pallas as pl
from jax.experimental.pallas import tpu as pltpu


def _round_up(n, m):
    return ((n + m - 1) // m) * m


def clip_classifier_kernel(x_ref, wproj_ref, labels_t_ref, scale_ref,
                           out_ref, acc_ref):
    # Grid: (M tiles over padded batch, K tiles over padded feature dim F).
    # x_ref:        [tm, tk]   flattened image tile, bf16 (VMEM)
    # wproj_ref:    [tk, Dp]   visual-projection weight tile, bf16 (VMEM)
    # labels_t_ref: [Dp, Lp]   label embeddings (pre-normalized, transposed,
    #                          zero-padded), bf16 (VMEM, resident across K)
    # scale_ref:    [1]        logit_scale, f32 (SMEM scalar)
    # out_ref:      [tm, Lp]   similarity logits, f32 (VMEM, resident across K)
    # acc_ref:      [tm, Dp]   f32 feature accumulator (VMEM scratch)
    k = pl.program_id(1)

    @pl.when(k == 0)
    def _():
        acc_ref[...] = jnp.zeros_like(acc_ref)

    # "get_image_features" stand-in: K-tiled bf16 MXU matmul, f32 accumulation.
    acc_ref[...] += jnp.dot(x_ref[...], wproj_ref[...],
                            preferred_element_type=jnp.float32)

    @pl.when(k == pl.num_programs(1) - 1)
    def _():
        feat = acc_ref[...]                                    # [tm, Dp] f32
        # Squared L2 norm per row; clamp so zero-padded batch rows stay finite
        # (0 * rsqrt(tiny) = 0 instead of 0 * inf = NaN).
        sq_norm = jnp.maximum(
            jnp.sum(feat * feat, axis=-1, keepdims=True), 1e-30)  # [tm, 1]
        # Unnormalized similarity vs. (already L2-normalized) label embeddings.
        raw = jnp.dot(feat.astype(jnp.bfloat16), labels_t_ref[...],
                      preferred_element_type=jnp.float32)      # [tm, Lp]
        # Fused epilogue: (raw / ||feat||) * exp(logit_scale) as one VPU
        # multiply; rsqrt/exp go to the otherwise-idle EUP slot.
        out_ref[...] = raw * (jax.lax.rsqrt(sq_norm) * jnp.exp(scale_ref[0]))


def clip_classifier_forward(images, w_proj, labels_embeddings, logit_scale):
    """
    images:            [B, C, H, W] float32 (NCHW, as in PyTorch)
    w_proj:            [C*H*W, D]   float32 (stand-in visual projection)
    labels_embeddings: [L, D]       float32 (already L2-normalized, as stored
                                     in the nn.Parameter in __init__)
    logit_scale:       scalar       float32
    returns logits:    [B, L]       float32
    """
    B = images.shape[0]
    F = images.shape[1] * images.shape[2] * images.shape[3]
    D = w_proj.shape[1]
    L = labels_embeddings.shape[0]

    # --- tiling / padding choices ------------------------------------------
    # bf16 packs 16 rows per vreg tile -> pad B to a multiple of 16.
    # D and L padded to 128 (lane width) so both matmuls see full MXU tiles and
    # the output gets unmasked vector stores.  (At large L on v6e/v7x, a 256
    # alignment would match the 2x256x256 MXU; irrelevant at L=8.)
    tk = 512 if F >= 512 else _round_up(F, 128)
    F_pad = _round_up(F, tk)
    B_pad = _round_up(max(B, 16), 16)
    tm = B_pad if B_pad <= 128 else 128
    B_pad = _round_up(B_pad, tm)
    D_pad = _round_up(D, 128)
    L_pad = _round_up(L, 128)
    grid = (B_pad // tm, F_pad // tk)

    # --- inputs (bf16, zero-padded; padding is mathematically inert) --------
    x_flat = images.reshape(B, F).astype(jnp.bfloat16)
    x_pad = jnp.pad(x_flat, ((0, B_pad - B), (0, F_pad - F)))
    # NOTE: the padded bf16 parameter copies below are static; in a real
    # deployment they should be built once and cached, not rebuilt per call.
    w_pad = jnp.pad(w_proj.astype(jnp.bfloat16),
                    ((0, F_pad - F), (0, D_pad - D)))
    labels_t_pad = jnp.pad(labels_embeddings.T.astype(jnp.bfloat16),
                           ((0, D_pad - D), (0, L_pad - L)))
    scale_arr = jnp.reshape(logit_scale, (1,)).astype(jnp.float32)

    # --- VMEM budget (double-buffered x/w/labels/out tiles + f32 scratch) ---
    # Kept well under 48 MiB so the same tiling is safe on v7x (64 MiB VMEM).
    vmem_needed = (2 * tm * tk * 2 + 2 * tk * D_pad * 2
                   + 2 * D_pad * L_pad * 2 + 2 * tm * L_pad * 4
                   + tm * D_pad * 4)
    vmem_limit = int(min(48 * 1024 * 1024,
                         max(8 * 1024 * 1024, 4 * vmem_needed)))

    cost = pl.CostEstimate(
        flops=2 * B_pad * F_pad * D_pad + 2 * B_pad * D_pad * L_pad,
        transcendentals=B_pad + grid[0],               # rsqrt per row + exp
        bytes_accessed=(x_pad.size + w_pad.size + labels_t_pad.size) * 2
                       + B_pad * L_pad * 4 + 4,
    )

    out = pl.pallas_call(
        clip_classifier_kernel,
        out_shape=jax.ShapeDtypeStruct((B_pad, L_pad), jnp.float32),
        grid_spec=pltpu.PrefetchScalarGridSpec(
            num_scalar_prefetch=0,
            grid=grid,
            in_specs=[
                pl.BlockSpec((tm, tk), lambda i, k: (i, k)),        # x tile
                pl.BlockSpec((tk, D_pad), lambda i, k: (k, 0)),     # w tile
                pl.BlockSpec((D_pad, L_pad), lambda i, k: (0, 0)),  # labels (resident)
                pl.BlockSpec(memory_space=pltpu.MemorySpace.SMEM),  # logit_scale
            ],
            out_specs=pl.BlockSpec((tm, L_pad), lambda i, k: (i, 0)),
            scratch_shapes=[pltpu.VMEM((tm, D_pad), jnp.float32)],
        ),
        compiler_params=pltpu.CompilerParams(
            dimension_semantics=("parallel", "arbitrary"),
            vmem_limit_bytes=vmem_limit,
        ),
        cost_estimate=cost,
    )(x_pad, w_pad, labels_t_pad, scale_arr)

    return out[:B, :L]


if __name__ == "__main__":
    # Small shapes consistent with the module's forward:
    #   batch=2, channels=4, spatial=16x16, feature dim D=32, num labels L=8.
    B, C, H, W = 2, 4, 16, 16
    D, L = 32, 8
    F = C * H * W

    key = jax.random.PRNGKey(0)
    k_img, k_proj, k_lab = jax.random.split(key, 3)

    images = jax.random.normal(k_img, (B, C, H, W), dtype=jnp.float32)

    # Deterministic parameter init (synthetic, not a checkpoint load).
    w_proj = jax.random.normal(k_proj, (F, D), dtype=jnp.float32) * 0.02

    # labels_embeddings: generated once in __init__ and stored L2-normalized.
    labels_raw = jax.random.normal(k_lab, (L, D), dtype=jnp.float32)
    labels_embeddings = labels_raw / jnp.linalg.norm(
        labels_raw, axis=-1, keepdims=True)

    # logit_scale = log(1/0.07), as in nn.Parameter(torch.ones([]) * np.log(1/0.07))
    logit_scale = jnp.asarray(np.log(1.0 / 0.07), dtype=jnp.float32)

    logits = clip_classifier_forward(images, w_proj, labels_embeddings,
                                     logit_scale)
    logits = jax.block_until_ready(logits)
    assert logits.shape == (B, L)

    # Pure-JAX f32 reference of the same math (kernel uses bf16 inputs with
    # f32 accumulation, so the tolerance is loosened accordingly).
    feat_ref = images.reshape(B, F) @ w_proj
    feat_ref = feat_ref / jnp.linalg.norm(feat_ref, axis=-1, keepdims=True)
    ref = (feat_ref @ labels_embeddings.T) * jnp.exp(logit_scale)
    np.testing.assert_allclose(np.asarray(logits), np.asarray(ref),
                               rtol=3e-2, atol=1.5e-1)

    print("KERNEL_OK")
</pallas_src>

<mosaic_0001>
module attributes {stable_mosaic.version = 11 : i64} {
  func.func @clip_classifier_kernel(%arg0: i32, %arg1: i32, %arg2: memref<16x512xbf16, #tpu.memory_space<vmem>>, %arg3: memref<512x128xbf16, #tpu.memory_space<vmem>>, %arg4: memref<128x128xbf16, #tpu.memory_space<vmem>>, %arg5: memref<1xf32, #tpu.memory_space<smem>>, %arg6: memref<16x128xf32, #tpu.memory_space<vmem>>, %arg7: memref<16x128xf32, #tpu.memory_space<vmem>>) attributes {dimension_semantics = [#tpu.dimension_semantics<parallel>, #tpu.dimension_semantics<arbitrary>], iteration_bounds = array<i64: 1, 2>, scalar_prefetch = 0 : i64, scratch_operands = 1 : i64, tpu.core_type = #tpu.core_type<tc>, window_params = [{transform_indices = @transform_0, window_bounds = array<i64: 16, 512>}, {transform_indices = @transform_1, window_bounds = array<i64: 512, 128>}, {pipeline_mode = #tpu.pipeline_mode<synchronous>, transform_indices = @transform_2, window_bounds = array<i64: 128, 128>}, {transform_indices = @transform_3, window_bounds = array<i64: 1>}, {transform_indices = @transform_4, window_bounds = array<i64: 16, 128>}]} {
    %c0_i32 = arith.constant 0 : i32
    %0 = arith.cmpi eq, %arg1, %c0_i32 : i32
    %1 = arith.extui %0 : i1 to i32
    %c0_i32_0 = arith.constant 0 : i32
    %2 = arith.cmpi ne, %1, %c0_i32_0 : i32
    scf.if %2 {
      %cst_9 = arith.constant 0.000000e+00 : f32
      %12 = vector.broadcast %cst_9 : f32 to vector<16x128xf32>
      %c0_10 = arith.constant 0 : index
      %c0_11 = arith.constant 0 : index
      %13 = vector.load %arg7[%c0_10, %c0_11] : memref<16x128xf32, #tpu.memory_space<vmem>>, vector<16x128xf32>
      tpu.vector_store %arg7[%c0_10, %c0_11], %12 {strides = array<i32>} : memref<16x128xf32, #tpu.memory_space<vmem>>, vector<16x128xf32>,
    } else {
    }
    %c0 = arith.constant 0 : index
    %c0_1 = arith.constant 0 : index
    %3 = vector.load %arg7[%c0, %c0_1] : memref<16x128xf32, #tpu.memory_space<vmem>>, vector<16x128xf32>
    %c0_2 = arith.constant 0 : index
    %c0_3 = arith.constant 0 : index
    %4 = vector.load %arg2[%c0_2, %c0_3] : memref<16x512xbf16, #tpu.memory_space<vmem>>, vector<16x512xbf16>
    %c0_4 = arith.constant 0 : index
    %c0_5 = arith.constant 0 : index
    %5 = vector.load %arg3[%c0_4, %c0_5] : memref<512x128xbf16, #tpu.memory_space<vmem>>, vector<512x128xbf16>
    %cst = arith.constant dense<0.000000e+00> : vector<16x128xf32>
    %6 = tpu.matmul %4, %5, %cst {dimension_numbers = #tpu.dot_dimension_numbers<[1], [0], [0], [1], [0, 0, 1, 1], [], []>} : vector<16x512xbf16>, vector<512x128xbf16>, vector<16x128xf32> -> vector<16x128xf32>
    %7 = arith.addf %3, %6 : vector<16x128xf32>
    %c0_6 = arith.constant 0 : index
    %c0_7 = arith.constant 0 : index
    %8 = vector.load %arg7[%c0_6, %c0_7] : memref<16x128xf32, #tpu.memory_space<vmem>>, vector<16x128xf32>
    tpu.vector_store %arg7[%c0_6, %c0_7], %7 {strides = array<i32>} : memref<16x128xf32, #tpu.memory_space<vmem>>, vector<16x128xf32>,
    %c1_i32 = arith.constant 1 : i32
    %9 = arith.cmpi eq, %arg1, %c1_i32 : i32
    %10 = arith.extui %9 : i1 to i32
    %c0_i32_8 = arith.constant 0 : i32
    %11 = arith.cmpi ne, %10, %c0_i32_8 : i32
    scf.if %11 {
      %c0_9 = arith.constant 0 : index
      %c0_10 = arith.constant 0 : index
      %12 = vector.load %arg7[%c0_9, %c0_10] : memref<16x128xf32, #tpu.memory_space<vmem>>, vector<16x128xf32>
      %13 = arith.mulf %12, %12 : vector<16x128xf32>
      %cst_11 = arith.constant dense<0.000000e+00> : vector<16xf32>
      %14 = vector.multi_reduction <add>, %13, %cst_11 [1] : vector<16x128xf32> to vector<16xf32>
      %15 = vector.shape_cast %14 : vector<16xf32> to vector<16x1xf32>
      %cst_12 = arith.constant 1.000000e-30 : f32
      %16 = vector.broadcast %cst_12 : f32 to vector<16x1xf32>
      %17 = arith.maximumf %15, %16 : vector<16x1xf32>
      %18 = arith.truncf %12 : vector<16x128xf32> to vector<16x128xbf16>
      %c0_13 = arith.constant 0 : index
      %c0_14 = arith.constant 0 : index
      %19 = vector.load %arg4[%c0_13, %c0_14] : memref<128x128xbf16, #tpu.memory_space<vmem>>, vector<128x128xbf16>
      %cst_15 = arith.constant dense<0.000000e+00> : vector<16x128xf32>
      %20 = tpu.matmul %18, %19, %cst_15 {dimension_numbers = #tpu.dot_dimension_numbers<[1], [0], [0], [1], [0, 0, 1, 1], [], []>} : vector<16x128xbf16>, vector<128x128xbf16>, vector<16x128xf32> -> vector<16x128xf32>
      %21 = math.rsqrt %17 : vector<16x1xf32>
      %c0_16 = arith.constant 0 : index
      %22 = memref.load %arg5[%c0_16] : memref<1xf32, #tpu.memory_space<smem>>
      %23 = math.exp %22 : f32
      %24 = vector.broadcast %23 : f32 to vector<16x1xf32>
      %25 = arith.mulf %21, %24 : vector<16x1xf32>
      %26 = vector.broadcast %25 : vector<16x1xf32> to vector<16x128xf32>
      %27 = arith.mulf %20, %26 : vector<16x128xf32>
      %c0_17 = arith.constant 0 : index
      %c0_18 = arith.constant 0 : index
      %28 = vector.load %arg6[%c0_17, %c0_18] : memref<16x128xf32, #tpu.memory_space<vmem>>, vector<16x128xf32>
      tpu.vector_store %arg6[%c0_17, %c0_18], %27 {strides = array<i32>} : memref<16x128xf32, #tpu.memory_space<vmem>>, vector<16x128xf32>,
    } else {
    }
    return
  }
  func.func @transform_0(%arg0: i32, %arg1: i32) -> (i32, i32) {
    %c0_i32 = arith.constant 0 : i32
    return %arg0, %arg1 : i32, i32
  }
  func.func @transform_1(%arg0: i32, %arg1: i32) -> (i32, i32) {
    %c0_i32 = arith.constant 0 : i32
    %c0_i32_0 = arith.constant 0 : i32
    return %arg1, %c0_i32 : i32, i32
  }
  func.func @transform_2(%arg0: i32, %arg1: i32) -> (i32, i32) {
    %c0_i32 = arith.constant 0 : i32
    %c0_i32_0 = arith.constant 0 : i32
    %c0_i32_1 = arith.constant 0 : i32
    return %c0_i32, %c0_i32_0 : i32, i32
  }
  func.func @transform_3(%arg0: i32, %arg1: i32) -> i32 {
    %c0_i32 = arith.constant 0 : i32
    %c0_i32_0 = arith.constant 0 : i32
    return %c0_i32 : i32
  }
  func.func @transform_4(%arg0: i32, %arg1: i32) -> (i32, i32) {
    %c0_i32 = arith.constant 0 : i32
    %c0_i32_0 = arith.constant 0 : i32
    return %arg0, %c0_i32 : i32, i32
  }
}

</mosaic_0001>

<llo_original>
// kernel: tpu_custom_call.1
$region0: #{tpu_custom_call.1}
  #allocation0 [shape = 'u32[]', space=smem, size = 0x4, offset = 0x4, fixed_abs, tag = 'smem constant byte address 0x4 - core index']
  #allocation1 [shape = 'u32[144,128]{1,0:T(1,128)}', space=vmem, size = 0x12000, scoped, tag = 'internal scratch']
  #allocation2 [shape = 'f32[16,128]{1,0:T(8,128)}', space=vmem, size = 0x2000, scoped, tag = 'scratch operand']
  #allocation3 [shape = 'f32[1]{0:T(128)S(6)}', space=smem, size = 0x200, scoped, tag = 'scoped memory for tpu_custom_call.1']
  %s0 = inlined_call_operand.hbm [shape: bf16[16,1024], index: 0, kind: input, shape index: {}]
  %s1 = inlined_call_operand.hbm [shape: bf16[1024,128], index: 1, kind: input, shape index: {}]
  %s2 = inlined_call_operand.hbm [shape: bf16[128,128], index: 2, kind: input, shape index: {}]
  %s3 = inlined_call_operand.<no memory space> [shape: f32[1], index: 3, kind: input, shape index: {}]
  %s4 = inlined_call_operand.hbm [shape: f32[16,128], index: 4, kind: output, shape index: {}]
  %s5 = sld [smem:[#allocation0]]
  $region69: #{tpu_custom_call.1} parent=0
    _
  %s7 = ssub.s32 1, %s5
  %s8 = scalar_select 0, %s7, %s5
  %9 = sst [smem:[#allocation3]] %s3
  $region1: #{tpu_custom_call.1} parent=0
    #allocation4 [shape = 'u8[32768]{0}', space=vmem, size = 0x8000, scoped, tag = 'input window, operand 0']
    #allocation5 [shape = 's32[2]{0}', space=sflag, size = 0x8, scoped, tag = 'scoped memory for tpu_custom_call.1']
    #allocation6 [shape = 's32[2]{0}', space=sflag, size = 0x8, scoped, tag = 'scoped memory for tpu_custom_call.1']
    #allocation7 [shape = 'u8[262144]{0}', space=vmem, size = 0x40000, scoped, tag = 'input window, operand 1']
    #allocation8 [shape = 's32[2]{0}', space=sflag, size = 0x8, scoped, tag = 'scoped memory for tpu_custom_call.1']
    #allocation9 [shape = 'u8[32768]{0}', space=vmem, size = 0x8000, scoped, tag = 'input window, operand 2, single buffered']
    #allocation10 [shape = 'u8[8192]{0}', space=vmem, size = 0x2000, scoped, tag = 'output window, operand 0, single buffered']
    %10 = vsyncpa [#allocation5], 0
    %s11 = scalar_lea.sflag [#allocation5], 1
    %12 = vsyncpa %s11, 0
    %13 = vsyncpa [#allocation8], 0
    %s14 = scalar_lea.sflag [#allocation8], 1
    %15 = vsyncpa %s14, 0
    %16 = vsyncpa [#allocation6], 0
    loop: start=0, step=1, limit=4
    $region2: #{tpu_custom_call.1} parent=1 // loop_pre_header
      _
    $region3: #{tpu_custom_call.1} parent=1 // loop_header
      %s18 = sphi 0, %s22
      %p19 = scmp.ge.s32.totalorder %s18, 4
      %s25 = sphi 0, %s37
      %s26 = sphi 0, %s33
      %s27 = sphi 0, %s25
      %s28 = sphi 0, %s26
      %s29 = sphi 0, %s27
      %s30 = sphi 0, %s28
      %s42 = sphi 0, %s44
      %s45 = sphi 0, %s42
      %s46 = sphi 0, %s45
      %s62 = sphi 0, %s46
      %s68 = sphi 0, %s70
      %s71 = sphi 0, %s68
      %s72 = sphi 0, %s71
      %s88 = sphi 0, %s72
      %s92 = sphi 0, %s92
      %s94 = sphi 0, %s92
      %s95 = sphi 0, %s94
      %s109 = sphi 0, %s95
      %s113 = sphi 0, %s113
      %s115 = sphi 0, %s113
      %s116 = sphi 0, %s115
      %s130 = sphi 0, %s116
      %s136 = sphi 0, %s138
      %s139 = sphi 0, %s136
      %s140 = sphi 0, %s139
      %s156 = sphi 0, %s140
    $region4: #{tpu_custom_call.1} parent=1 // loop_header_branch
      %21 = sbr.rel (%p19) target = $region8
    $region5: #{tpu_custom_call.1} parent=1 // loop_body
      %s23 = ssub.s32 %s18, 1
      %s24 = ssub.s32 %s18, 2
      %s31 = sadd.s32 1, %s26
      %p32 = scmp.ge.s32.totalorder %s31, 2
      %s33 = scalar_select %p32, 0, %s31
      %s34 = sadd.s32 1, %s25
      %s35 = scalar_select %p32, %s34, %s25
      %p36 = scmp.ge.s32.totalorder %s35, 1
      %s37 = scalar_select %p36, 0, %s35
      %s38 = ssub.s32 %s25, %s37
      %s39 = ssub.s32 %s26, %s33
      %s40 = sor.u32 %s38, %s39
      %p41 = scmp.eq.s32.totalorder %s40, 0
      %s43 = sadd.s32 %s42, 1
      %s44 = scalar_select %p41, %s42, %s43
      %p47 = pneg %p41
      %p48 = scmp.eq.s32.totalorder %s18, 1
      %p49 = por %p47, %p48
      %p50 = scmp.ne.s32.totalorder %s42, %s45
      %p51 = scmp.eq.s32.totalorder %s18, 0
      %p52 = por %p50, %p51
      %p53 = scmp.ne.s32.totalorder %s42, %s45
      %p54 = scmp.eq.s32.totalorder %s23, 1
      %p55 = por %p53, %p54
      %p56 = scmp.ne.s32.totalorder %s45, %s46
      %p57 = scmp.eq.s32.totalorder %s23, 0
      %p58 = por %p56, %p57
      %p59 = scmp.ne.s32.totalorder %s45, %s46
      %p60 = scmp.eq.s32.totalorder %s24, 1
      %p61 = por %p59, %p60
      %p63 = scmp.ne.s32.totalorder %s46, %s62
      %p64 = scmp.eq.s32.totalorder %s24, 0
      %p65 = por %p63, %p64
      %s66 = ssub.s32 %s26, %s33
      %p67 = scmp.eq.s32.totalorder %s66, 0
      %s69 = sadd.s32 %s68, 1
      %s70 = scalar_select %p67, %s68, %s69
      %p73 = pneg %p67
      %p74 = scmp.eq.s32.totalorder %s18, 1
      %p75 = por %p73, %p74
      %p76 = scmp.ne.s32.totalorder %s68, %s71
      %p77 = scmp.eq.s32.totalorder %s18, 0
      %p78 = por %p76, %p77
      %p79 = scmp.ne.s32.totalorder %s68, %s71
      %p80 = scmp.eq.s32.totalorder %s23, 1
      %p81 = por %p79, %p80
      %p82 = scmp.ne.s32.totalorder %s71, %s72
      %p83 = scmp.eq.s32.totalorder %s23, 0
      %p84 = por %p82, %p83
      %p85 = scmp.ne.s32.totalorder %s71, %s72
      %p86 = scmp.eq.s32.totalorder %s24, 1
      %p87 = por %p85, %p86
      %p89 = scmp.ne.s32.totalorder %s72, %s88
      %p90 = scmp.eq.s32.totalorder %s24, 0
      %p91 = por %p89, %p90
      %s93 = sadd.s32 %s92, 1
      %p96 = scmp.eq.s32.totalorder %s18, 1
      %p97 = scmp.ne.s32.totalorder %s92, %s94
      %p98 = scmp.eq.s32.totalorder %s18, 0
      %p99 = por %p97, %p98
      %p100 = scmp.ne.s32.totalorder %s92, %s94
      %p101 = scmp.eq.s32.totalorder %s23, 1
      %p102 = por %p100, %p101
      %p103 = scmp.ne.s32.totalorder %s94, %s95
      %p104 = scmp.eq.s32.totalorder %s23, 0
      %p105 = por %p103, %p104
      %p106 = scmp.ne.s32.totalorder %s94, %s95
      %p107 = scmp.eq.s32.totalorder %s24, 1
      %p108 = por %p106, %p107
      %p110 = scmp.ne.s32.totalorder %s95, %s109
      %p111 = scmp.eq.s32.totalorder %s24, 0
      %p112 = por %p110, %p111
      %s114 = sadd.s32 %s113, 1
      %p117 = scmp.eq.s32.totalorder %s18, 1
      %p118 = scmp.ne.s32.totalorder %s113, %s115
      %p119 = scmp.eq.s32.totalorder %s18, 0
      %p120 = por %p118, %p119
      %p121 = scmp.ne.s32.totalorder %s113, %s115
      %p122 = scmp.eq.s32.totalorder %s23, 1
      %p123 = por %p121, %p122
      %p124 = scmp.ne.s32.totalorder %s115, %s116
      %p125 = scmp.eq.s32.totalorder %s23, 0
      %p126 = por %p124, %p125
      %p127 = scmp.ne.s32.totalorder %s115, %s116
      %p128 = scmp.eq.s32.totalorder %s24, 1
      %p129 = por %p127, %p128
      %p131 = scmp.ne.s32.totalorder %s116, %s130
      %p132 = scmp.eq.s32.totalorder %s24, 0
      %p133 = por %p131, %p132
      %s134 = ssub.s32 %s25, %s37
      %p135 = scmp.eq.s32.totalorder %s134, 0
      %s137 = sadd.s32 %s136, 1
      %s138 = scalar_select %p135, %s136, %s137
      %p141 = pneg %p135
      %p142 = scmp.eq.s32.totalorder %s18, 1
      %p143 = por %p141, %p142
      %p144 = scmp.ne.s32.totalorder %s136, %s139
      %p145 = scmp.eq.s32.totalorder %s18, 0
      %p146 = por %p144, %p145
      %p147 = scmp.ne.s32.totalorder %s136, %s139
      %p148 = scmp.eq.s32.totalorder %s23, 1
      %p149 = por %p147, %p148
      %p150 = scmp.ne.s32.totalorder %s139, %s140
      %p151 = scmp.eq.s32.totalorder %s23, 0
      %p152 = por %p150, %p151
      %p153 = scmp.ne.s32.totalorder %s139, %s140
      %p154 = scmp.eq.s32.totalorder %s24, 1
      %p155 = por %p153, %p154
      %p157 = scmp.ne.s32.totalorder %s140, %s156
      %p158 = scmp.eq.s32.totalorder %s24, 0
      %p159 = por %p157, %p158
      %p160 = scmp.le.s32.totalorder 1, %s18
      %p161 = scmp.lt.s32.totalorder %s18, 3
      %p162 = pnand %p160, %p161
      %p163 = pneg %p162
      // Predicated region
      $region9: #{tpu_custom_call.1} parent=5 // pred_check
        _
      $region10: #{tpu_custom_call.1} parent=5 // pred_check_branch
        %165 = sbr.rel (%p162) target = $region12
      $region11: #{tpu_custom_call.1} parent=5 // pred_region
        %s166 = ssub.s32 %s18, 1
        // Predicated region
        $region13: #{tpu_custom_call.1} parent=11 // pred_check
          %p167 = pneg %p105
        $region14: #{tpu_custom_call.1} parent=11 // pred_check_branch
          %169 = sbr.rel (%p167) target = $region16
        $region15: #{tpu_custom_call.1} parent=11 // pred_region
          %s171 = ssub.s32 1024, 1024
          %172 = vsyncadd [#allocation8], %s171
          %s173 = sshll.u32 [#allocation9], 4
          %s174 = int_to_ptr.vmem [resolvable:$true] %s173
          %179 = dma.hbm_to_vmem [thread:$0]  %s2, 1024, %s174, [#allocation8], 64, 64, 4
        $region16: #{tpu_custom_call.1} parent=11 // pred_fallthru
          _
        // Predicated region
        $region17: #{tpu_custom_call.1} parent=11 // pred_check
          %p180 = pneg %p126
        $region18: #{tpu_custom_call.1} parent=11 // pred_check_branch
          %182 = sbr.rel (%p180) target = $region20
        $region19: #{tpu_custom_call.1} parent=11 // pred_region
          _
        $region20: #{tpu_custom_call.1} parent=11 // pred_fallthru
          _
      $region12: #{tpu_custom_call.1} parent=5 // pred_fallthru
        _
      %p183 = scmp.lt.s32.totalorder %s18, 2
      // Predicated region
      $region21: #{tpu_custom_call.1} parent=5 // pred_check
        %p184 = pneg %p183
      $region22: #{tpu_custom_call.1} parent=5 // pred_check_branch
        %186 = sbr.rel (%p184) target = $region24
      $region23: #{tpu_custom_call.1} parent=5 // pred_region
        // Predicated region
        $region25: #{tpu_custom_call.1} parent=23 // pred_check
          %p187 = pneg %p52
        $region26: #{tpu_custom_call.1} parent=23 // pred_check_branch
          %189 = sbr.rel (%p187) target = $region28
        $region27: #{tpu_custom_call.1} parent=23 // pred_region
          %s190 = sand.u32 %s42, 1
          %s191 = scalar_lea.sflag [#allocation5], %s190
          %s192 = sand.u32 %s42, 1
          %s193 = smul.addr %s192, 32
          %s194 = scalar_lea.vmem [#allocation4], %s193
          %s195 = smul.u32 2, %s25
          %s196 = smul.u32 4, %s26
          %s198 = ssub.s32 512, 512
          %199 = vsyncadd %s191, %s198
          %s200 = smul.addr %s195, 8
          %s201 = sadd.s32 %s196, %s200
          %s202 = smul.addr %s201, 64
          %s203 = scalar_lea.hbm %s0, %s202
          %s204 = sshll.u32 %s194, 4
          %s205 = int_to_ptr.vmem [resolvable:$true] %s204
          %210 = dma.hbm_to_vmem [thread:$0]  %s203, 512, %s205, %s191, 512, 256, 16
        $region28: #{tpu_custom_call.1} parent=23 // pred_fallthru
          _
        // Predicated region
        $region29: #{tpu_custom_call.1} parent=23 // pred_check
          %p211 = pneg %p78
        $region30: #{tpu_custom_call.1} parent=23 // pred_check_branch
          %213 = sbr.rel (%p211) target = $region32
        $region31: #{tpu_custom_call.1} parent=23 // pred_region
          %s214 = sand.u32 %s18, 1
          %s215 = scalar_lea.sflag [#allocation8], %s214
          %s216 = sand.u32 %s68, 1
          %s217 = smul.addr %s216, 256
          %s218 = scalar_lea.vmem [#allocation7], %s217
          %s219 = smul.u32 64, %s26
          %s221 = ssub.s32 4096, 4096
          %222 = vsyncadd %s215, %s221
          %s223 = smul.addr %s219, 64
          %s224 = scalar_lea.hbm %s1, %s223
          %s225 = sshll.u32 %s218, 4
          %s226 = int_to_ptr.vmem [resolvable:$true] %s225
          %231 = dma.hbm_to_vmem [thread:$0]  %s224, 4096, %s226, %s215, 64, 64, 4
        $region32: #{tpu_custom_call.1} parent=23 // pred_fallthru
          _
      $region24: #{tpu_custom_call.1} parent=5 // pred_fallthru
        _
      %p232 = scmp.le.s32.totalorder 1, %s18
      %p233 = scmp.lt.s32.totalorder %s18, 3
      %p234 = pnand %p232, %p233
      %p235 = pneg %p234
      // Predicated region
      $region33: #{tpu_custom_call.1} parent=5 // pred_check
        _
      $region34: #{tpu_custom_call.1} parent=5 // pred_check_branch
        %237 = sbr.rel (%p234) target = $region36
      $region35: #{tpu_custom_call.1} parent=5 // pred_region
        %s238 = ssub.s32 %s18, 1
        %s239 = sand.u32 %s45, 1
        %s240 = scalar_lea.sflag [#allocation5], %s239
        %s241 = sand.u32 %s45, 1
        %s242 = smul.addr %s241, 32
        %s243 = scalar_lea.vmem [#allocation4], %s242
        // Predicated region
        $region37: #{tpu_custom_call.1} parent=35 // pred_check
          %p244 = pneg %p58
        $region38: #{tpu_custom_call.1} parent=35 // pred_check_branch
          %246 = sbr.rel (%p244) target = $region40
        $region39: #{tpu_custom_call.1} parent=35 // pred_region
          %247 = dma.done %s240, 512
        $region40: #{tpu_custom_call.1} parent=35 // pred_fallthru
          _
        %s248 = sand.u32 %s23, 1
        %s249 = scalar_lea.sflag [#allocation8], %s248
        %s250 = sand.u32 %s71, 1
        %s251 = smul.addr %s250, 256
        %s252 = scalar_lea.vmem [#allocation7], %s251
        // Predicated region
        $region41: #{tpu_custom_call.1} parent=35 // pred_check
          %p253 = pneg %p84
        $region42: #{tpu_custom_call.1} parent=35 // pred_check_branch
          %255 = sbr.rel (%p253) target = $region44
        $region43: #{tpu_custom_call.1} parent=35 // pred_region
          %256 = dma.done %s249, 4096
        $region44: #{tpu_custom_call.1} parent=35 // pred_fallthru
          _
        // Predicated region
        $region45: #{tpu_custom_call.1} parent=35 // pred_check
          %p257 = pneg %p105
        $region46: #{tpu_custom_call.1} parent=35 // pred_check_branch
          %259 = sbr.rel (%p257) target = $region48
        $region47: #{tpu_custom_call.1} parent=35 // pred_region
          %260 = dma.done [#allocation8], 1024
        $region48: #{tpu_custom_call.1} parent=35 // pred_fallthru
          _
        %s261 = sand.u32 %s45, 1
        %s262 = scalar_lea.sflag [#allocation5], %s261
        %s263 = sand.u32 %s45, 1
        %s264 = smul.addr %s263, 32
        %s265 = scalar_lea.vmem [#allocation4], %s264
        %p266 = pneg %p58
        %p267 = pneg %p55
        %s268 = sand.u32 %s23, 1
        %s269 = scalar_lea.sflag [#allocation8], %s268
        %s270 = sand.u32 %s71, 1
        %s271 = smul.addr %s270, 256
        %s272 = scalar_lea.vmem [#allocation7], %s271
        %p273 = pneg %p84
        %p274 = pneg %p81
        %p275 = pneg %p105
        %p276 = pneg %p102
        %p277 = pneg %p126
        %p278 = pneg %p123
        %p279 = pneg %p152
        %p280 = pneg %p149
        %s281 = smul.u32 2, %s27
        %s282 = smul.u32 4, %s28
        %s283 = smul.u32 64, %s28
        %s284 = smul.u32 2, %s27
        %p286 = scmp.eq.s32.totalorder %s28, 0
        // Predicated region
        $region49: #{tpu_custom_call.1} parent=35 // pred_check
          %p287 = pneg %p286
        $region50: #{tpu_custom_call.1} parent=35 // pred_check_branch
          %289 = sbr.rel (%p287) target = $region52
        $region51: #{tpu_custom_call.1} parent=35 // pred_region
          %290 = vst [vmem:[#allocation2] sm:$0xff] 0.0
          %291 = vst [vmem:[#allocation2 + $0x8] sm:$0xff] 0.0
        $region52: #{tpu_custom_call.1} parent=35 // pred_fallthru
          _
        %v292 = vld [vmem:[#allocation2] sm:$0xff]
        %v293 = vld [vmem:[#allocation2 + $0x8] sm:$0xff]
        %v294 = vld [vmem:[%s243] sm:$0xff]
        %v295 = vld [vmem:[%s243 + $0x8] sm:$0xff]
        %v296 = vld [vmem:[%s243 + $0x10] sm:$0xff]
        %v297 = vld [vmem:[%s243 + $0x18] sm:$0xff]
        %v298 = vld [vmem:[%s252] sm:$0xf]
        %v299 = vld [vmem:[%s252 + $0x4] sm:$0xf]
        %v300 = vld [vmem:[%s252 + $0x8] sm:$0xf]
        %v301 = vld [vmem:[%s252 + $0xc] sm:$0xf]
        %v302 = vld [vmem:[%s252 + $0x10] sm:$0xf]
        %v303 = vld [vmem:[%s252 + $0x14] sm:$0xf]
        %v304 = vld [vmem:[%s252 + $0x18] sm:$0xf]
        %v305 = vld [vmem:[%s252 + $0x1c] sm:$0xf]
        %v306 = vld [vmem:[%s252 + $0x20] sm:$0xf]
        %v307 = vld [vmem:[%s252 + $0x24] sm:$0xf]
        %v308 = vld [vmem:[%s252 + $0x28] sm:$0xf]
        %v309 = vld [vmem:[%s252 + $0x2c] sm:$0xf]
        %v310 = vld [vmem:[%s252 + $0x30] sm:$0xf]
        %v311 = vld [vmem:[%s252 + $0x34] sm:$0xf]
        %v312 = vld [vmem:[%s252 + $0x38] sm:$0xf]
        %v313 = vld [vmem:[%s252 + $0x3c] sm:$0xf]
        %v314 = vld [vmem:[%s252 + $0x40] sm:$0xf]
        %v315 = vld [vmem:[%s252 + $0x44] sm:$0xf]
        %v316 = vld [vmem:[%s252 + $0x48] sm:$0xf]
        %v317 = vld [vmem:[%s252 + $0x4c] sm:$0xf]
        %v318 = vld [vmem:[%s252 + $0x50] sm:$0xf]
        %v319 = vld [vmem:[%s252 + $0x54] sm:$0xf]
        %v320 = vld [vmem:[%s252 + $0x58] sm:$0xf]
        %v321 = vld [vmem:[%s252 + $0x5c] sm:$0xf]
        %v322 = vld [vmem:[%s252 + $0x60] sm:$0xf]
        %v323 = vld [vmem:[%s252 + $0x64] sm:$0xf]
        %v324 = vld [vmem:[%s252 + $0x68] sm:$0xf]
        %v325 = vld [vmem:[%s252 + $0x6c] sm:$0xf]
        %v326 = vld [vmem:[%s252 + $0x70] sm:$0xf]
        %v327 = vld [vmem:[%s252 + $0x74] sm:$0xf]
        %v328 = vld [vmem:[%s252 + $0x78] sm:$0xf]
        %v329 = vld [vmem:[%s252 + $0x7c] sm:$0xf]
        %v330 = vld [vmem:[%s252 + $0x80] sm:$0xf]
        %v331 = vld [vmem:[%s252 + $0x84] sm:$0xf]
        %v332 = vld [vmem:[%s252 + $0x88] sm:$0xf]
        %v333 = vld [vmem:[%s252 + $0x8c] sm:$0xf]
        %v334 = vld [vmem:[%s252 + $0x90] sm:$0xf]
        %v335 = vld [vmem:[%s252 + $0x94] sm:$0xf]
        %v336 = vld [vmem:[%s252 + $0x98] sm:$0xf]
        %v337 = vld [vmem:[%s252 + $0x9c] sm:$0xf]
        %v338 = vld [vmem:[%s252 + $0xa0] sm:$0xf]
        %v339 = vld [vmem:[%s252 + $0xa4] sm:$0xf]
        %v340 = vld [vmem:[%s252 + $0xa8] sm:$0xf]
        %v341 = vld [vmem:[%s252 + $0xac] sm:$0xf]
        %v342 = vld [vmem:[%s252 + $0xb0] sm:$0xf]
        %v343 = vld [vmem:[%s252 + $0xb4] sm:$0xf]
        %v344 = vld [vmem:[%s252 + $0xb8] sm:$0xf]
        %v345 = vld [vmem:[%s252 + $0xbc] sm:$0xf]
        %v346 = vld [vmem:[%s252 + $0xc0] sm:$0xf]
        %v347 = vld [vmem:[%s252 + $0xc4] sm:$0xf]
        %v348 = vld [vmem:[%s252 + $0xc8] sm:$0xf]
        %v349 = vld [vmem:[%s252 + $0xcc] sm:$0xf]
        %v350 = vld [vmem:[%s252 + $0xd0] sm:$0xf]
        %v351 = vld [vmem:[%s252 + $0xd4] sm:$0xf]
        %v352 = vld [vmem:[%s252 + $0xd8] sm:$0xf]
        %v353 = vld [vmem:[%s252 + $0xdc] sm:$0xf]
        %v354 = vld [vmem:[%s252 + $0xe0] sm:$0xf]
        %v355 = vld [vmem:[%s252 + $0xe4] sm:$0xf]
        %v356 = vld [vmem:[%s252 + $0xe8] sm:$0xf]
        %v357 = vld [vmem:[%s252 + $0xec] sm:$0xf]
        %v358 = vld [vmem:[%s252 + $0xf0] sm:$0xf]
        %v359 = vld [vmem:[%s252 + $0xf4] sm:$0xf]
        %v360 = vld [vmem:[%s252 + $0xf8] sm:$0xf]
        %v361 = vld [vmem:[%s252 + $0xfc] sm:$0xf]
        %v366 = vunpack.c.l.b16 %v294
        %v367 = vunpack.c.h.b16 %v294
        %v368 = vunpack.c.l.b16 %v295
        %v369 = vunpack.c.h.b16 %v295
        %v370 = vunpack.c.l.b16 %v296
        %v371 = vunpack.c.h.b16 %v296
        %v372 = vunpack.c.l.b16 %v297
        %v373 = vunpack.c.h.b16 %v297
        %v374 = vpack.c.b16 %v370, %v366
        %v375 = vpack.c.b16 %v371, %v367
        %v376 = vpack.c.b16 %v372, %v368
        %v377 = vpack.c.b16 %v373, %v369
        %v446 = vunpack.c.l.b16 %v298
        %v447 = vunpack.c.l.b16 %v299
        %v448 = vunpack.c.l.b16 %v300
        %v449 = vunpack.c.l.b16 %v301
        %v450 = vunpack.c.l.b16 %v302
        %v451 = vunpack.c.l.b16 %v303
        %v452 = vunpack.c.l.b16 %v304
        %v453 = vunpack.c.l.b16 %v305
        %v454 = vunpack.c.l.b16 %v306
        %v455 = vunpack.c.l.b16 %v307
        %v456 = vunpack.c.l.b16 %v308
        %v457 = vunpack.c.l.b16 %v309
        %v458 = vunpack.c.l.b16 %v310
        %v459 = vunpack.c.l.b16 %v311
        %v460 = vunpack.c.l.b16 %v312
        %v461 = vunpack.c.l.b16 %v313
        %v462 = vunpack.c.l.b16 %v314
        %v463 = vunpack.c.l.b16 %v315
        %v464 = vunpack.c.l.b16 %v316
        %v465 = vunpack.c.l.b16 %v317
        %v466 = vunpack.c.l.b16 %v318
        %v467 = vunpack.c.l.b16 %v319
        %v468 = vunpack.c.l.b16 %v320
        %v469 = vunpack.c.l.b16 %v321
        %v470 = vunpack.c.l.b16 %v322
        %v471 = vunpack.c.l.b16 %v323
        %v472 = vunpack.c.l.b16 %v324
        %v473 = vunpack.c.l.b16 %v325
        %v474 = vunpack.c.l.b16 %v326
        %v475 = vunpack.c.l.b16 %v327
        %v476 = vunpack.c.l.b16 %v328
        %v477 = vunpack.c.l.b16 %v329
        %v478 = vunpack.c.l.b16 %v330
        %v479 = vunpack.c.l.b16 %v331
        %v480 = vunpack.c.l.b16 %v332
        %v481 = vunpack.c.l.b16 %v333
        %v482 = vunpack.c.l.b16 %v334
        %v483 = vunpack.c.l.b16 %v335
        %v484 = vunpack.c.l.b16 %v336
        %v485 = vunpack.c.l.b16 %v337
        %v486 = vunpack.c.l.b16 %v338
        %v487 = vunpack.c.l.b16 %v339
        %v488 = vunpack.c.l.b16 %v340
        %v489 = vunpack.c.l.b16 %v341
        %v490 = vunpack.c.l.b16 %v342
        %v491 = vunpack.c.l.b16 %v343
        %v492 = vunpack.c.l.b16 %v344
        %v493 = vunpack.c.l.b16 %v345
        %v494 = vunpack.c.l.b16 %v346
        %v495 = vunpack.c.l.b16 %v347
        %v496 = vunpack.c.l.b16 %v348
        %v497 = vunpack.c.l.b16 %v349
        %v498 = vunpack.c.l.b16 %v350
        %v499 = vunpack.c.l.b16 %v351
        %v500 = vunpack.c.l.b16 %v352
        %v501 = vunpack.c.l.b16 %v353
        %v502 = vunpack.c.l.b16 %v354
        %v503 = vunpack.c.l.b16 %v355
        %v504 = vunpack.c.l.b16 %v356
        %v505 = vunpack.c.l.b16 %v357
        %v506 = vunpack.c.l.b16 %v358
        %v507 = vunpack.c.l.b16 %v359
        %v508 = vunpack.c.l.b16 %v360
        %v509 = vunpack.c.l.b16 %v361
        %v510 = vpack.c.b16 %v447, %v446
        %v511 = vpack.c.b16 %v449, %v448
        %v512 = vpack.c.b16 %v451, %v450
        %v513 = vpack.c.b16 %v453, %v452
        %v514 = vpack.c.b16 %v455, %v454
        %v515 = vpack.c.b16 %v457, %v456
        %v516 = vpack.c.b16 %v459, %v458
        %v517 = vpack.c.b16 %v461, %v460
        %v518 = vpack.c.b16 %v463, %v462
        %v519 = vpack.c.b16 %v465, %v464
        %v520 = vpack.c.b16 %v467, %v466
        %v521 = vpack.c.b16 %v469, %v468
        %v522 = vpack.c.b16 %v471, %v470
        %v523 = vpack.c.b16 %v473, %v472
        %v524 = vpack.c.b16 %v475, %v474
        %v525 = vpack.c.b16 %v477, %v476
        %v526 = vpack.c.b16 %v479, %v478
        %v527 = vpack.c.b16 %v481, %v480
        %v528 = vpack.c.b16 %v483, %v482
        %v529 = vpack.c.b16 %v485, %v484
        %v530 = vpack.c.b16 %v487, %v486
        %v531 = vpack.c.b16 %v489, %v488
        %v532 = vpack.c.b16 %v491, %v490
        %v533 = vpack.c.b16 %v493, %v492
        %v534 = vpack.c.b16 %v495, %v494
        %v535 = vpack.c.b16 %v497, %v496
        %v536 = vpack.c.b16 %v499, %v498
        %v537 = vpack.c.b16 %v501, %v500
        %v538 = vpack.c.b16 %v503, %v502
        %v539 = vpack.c.b16 %v505, %v504
        %v540 = vpack.c.b16 %v507, %v506
        %v541 = vpack.c.b16 %v509, %v508
        %574 = vmatprep.subr.bf16.mxu0 0
        %575 = vmatpush1.bf16.msra.mxu0 %v517
        %576 = vmatprep.subr.bf16.mxu0 0
        %577 = vmatpush1.bf16.msra.mxu0 %v516
        %578 = vmatprep.subr.bf16.mxu0 0
        %579 = vmatpush1.bf16.msra.mxu0 %v515
        %580 = vmatprep.subr.bf16.mxu0 0
        %581 = vmatpush1.bf16.msra.mxu0 %v514
        %582 = vmatprep.subr.bf16.mxu0 0
        %583 = vmatpush1.bf16.msra.mxu0 %v513
        %584 = vmatprep.subr.bf16.mxu0 0
        %585 = vmatpush1.bf16.msra.mxu0 %v512
        %586 = vmatprep.subr.bf16.mxu0 0
        %587 = vmatpush1.bf16.msra.mxu0 %v511
        %588 = vmatprep.subr.bf16.mxu0 0
        %589 = vmatpush1.bf16.msra.mxu0 %v510
        %590 = vmatprep.subr.bf16.mxu0 0
        %591 = vmatpush2.bf16.msra.mxu0 %v525
        %592 = vmatprep.subr.bf16.mxu0 0
        %593 = vmatpush2.bf16.msra.mxu0 %v524
        %594 = vmatprep.subr.bf16.mxu0 0
        %595 = vmatpush2.bf16.msra.mxu0 %v523
        %596 = vmatprep.subr.bf16.mxu0 0
        %597 = vmatpush2.bf16.msra.mxu0 %v522
        %598 = vmatprep.subr.bf16.mxu0 0
        %599 = vmatpush2.bf16.msra.mxu0 %v521
        %600 = vmatprep.subr.bf16.mxu0 0
        %601 = vmatpush2.bf16.msra.mxu0 %v520
        %602 = vmatprep.subr.bf16.mxu0 0
        %603 = vmatpush2.bf16.msra.mxu0 %v519
        %604 = vmatprep.subr.bf16.mxu0 0
        %605 = vmatpush2.bf16.msra.mxu0 %v518
        %606 = vmatprep.mubr.bf16.mxu0 %v375
        %607 = vmatmul.mubr.bf16.gmra.mxu0 %v374
        %v608 = vpop.f32.mrf.mxu0
        %v609 = vadd.f32 0.0, %v608
        %v610 = vpop.f32.mrf.mxu0
        %v611 = vpop.f32.mrf.mxu0
        %v612 = vadd.f32 0.0, %v611
        %v613 = vpop.f32.mrf.mxu0
        %614 = vdwg.mxu0
        %615 = vmatprep.subr.bf16.mxu0 0
        %616 = vmatpush1.bf16.msra.mxu0 %v533
        %617 = vmatprep.subr.bf16.mxu0 0
        %618 = vmatpush1.bf16.msra.mxu0 %v532
        %619 = vmatprep.subr.bf16.mxu0 0
        %620 = vmatpush1.bf16.msra.mxu0 %v531
        %621 = vmatprep.subr.bf16.mxu0 0
        %622 = vmatpush1.bf16.msra.mxu0 %v530
        %623 = vmatprep.subr.bf16.mxu0 0
        %624 = vmatpush1.bf16.msra.mxu0 %v529
        %625 = vmatprep.subr.bf16.mxu0 0
        %626 = vmatpush1.bf16.msra.mxu0 %v528
        %627 = vmatprep.subr.bf16.mxu0 0
        %628 = vmatpush1.bf16.msra.mxu0 %v527
        %629 = vmatprep.subr.bf16.mxu0 0
        %630 = vmatpush1.bf16.msra.mxu0 %v526
        %631 = vmatprep.subr.bf16.mxu0 0
        %632 = vmatpush2.bf16.msra.mxu0 %v541
        %633 = vmatprep.subr.bf16.mxu0 0
        %634 = vmatpush2.bf16.msra.mxu0 %v540
        %635 = vmatprep.subr.bf16.mxu0 0
        %636 = vmatpush2.bf16.msra.mxu0 %v539
        %637 = vmatprep.subr.bf16.mxu0 0
        %638 = vmatpush2.bf16.msra.mxu0 %v538
        %639 = vmatprep.subr.bf16.mxu0 0
        %640 = vmatpush2.bf16.msra.mxu0 %v537
        %641 = vmatprep.subr.bf16.mxu0 0
        %642 = vmatpush2.bf16.msra.mxu0 %v536
        %643 = vmatprep.subr.bf16.mxu0 0
        %644 = vmatpush2.bf16.msra.mxu0 %v535
        %645 = vmatprep.subr.bf16.mxu0 0
        %646 = vmatpush2.bf16.msra.mxu0 %v534
        %647 = vmatprep.mubr.bf16.mxu0 %v377
        %648 = vmatmul.mubr.bf16.gmra.mxu0 %v376
        %v649 = vpop.f32.mrf.mxu0
        %v650 = vadd.f32 %v609, %v649
        %v651 = vpop.f32.mrf.mxu0
        %v652 = vpop.f32.mrf.mxu0
        %v653 = vadd.f32 %v612, %v652
        %v654 = vpop.f32.mrf.mxu0
        %655 = vdwg.mxu0
        %v656 = vadd.f32 %v292, %v650
        %v657 = vadd.f32 %v293, %v653
        %658 = vst [vmem:[#allocation2] sm:$0xff] %v656
        %659 = vst [vmem:[#allocation2 + $0x8] sm:$0xff] %v657
        %p660 = scmp.eq.s32.totalorder %s28, 1
        // Predicated region
        $region53: #{tpu_custom_call.1} parent=35 // pred_check
          %p661 = pneg %p660
        $region54: #{tpu_custom_call.1} parent=35 // pred_check_branch
          %663 = sbr.rel (%p661) target = $region56
        $region55: #{tpu_custom_call.1} parent=35 // pred_region
          %v664 = vld [vmem:[#allocation2] sm:$0xff]
          %v665 = vld [vmem:[#allocation2 + $0x8] sm:$0xff]
          %v666 = vmul.f32 %v664, %v664
          %v667 = vmul.f32 %v665, %v665
          %668 = vadd.xlane.f32.xlu0 %v666
          %v669 = vpop.xlane.xlu0 %668
          %670 = vadd.xlane.f32.xlu0 %v667
          %v671 = vpop.xlane.xlu0 %670
          %v672 = vmax.f32 %v669, 1e-30
          %v673 = vmax.f32 %v671, 1e-30
          %v674 = vpack.c.bf16 %v665, %v664
          %v675 = vld [vmem:[#allocation9] sm:$0xf]
          %v676 = vld [vmem:[#allocation9 + $0x4] sm:$0xf]
          %v677 = vld [vmem:[#allocation9 + $0x8] sm:$0xf]
          %v678 = vld [vmem:[#allocation9 + $0xc] sm:$0xf]
          %v679 = vld [vmem:[#allocation9 + $0x10] sm:$0xf]
          %v680 = vld [vmem:[#allocation9 + $0x14] sm:$0xf]
          %v681 = vld [vmem:[#allocation9 + $0x18] sm:$0xf]
          %v682 = vld [vmem:[#allocation9 + $0x1c] sm:$0xf]
          %v683 = vld [vmem:[#allocation9 + $0x20] sm:$0xf]
          %v684 = vld [vmem:[#allocation9 + $0x24] sm:$0xf]
          %v685 = vld [vmem:[#allocation9 + $0x28] sm:$0xf]
          %v686 = vld [vmem:[#allocation9 + $0x2c] sm:$0xf]
          %v687 = vld [vmem:[#allocation9 + $0x30] sm:$0xf]
          %v688 = vld [vmem:[#allocation9 + $0x34] sm:$0xf]
          %v689 = vld [vmem:[#allocation9 + $0x38] sm:$0xf]
          %v690 = vld [vmem:[#allocation9 + $0x3c] sm:$0xf]
          %v707 = vunpack.c.l.b16 %v675
          %v708 = vunpack.c.l.b16 %v676
          %v709 = vunpack.c.l.b16 %v677
          %v710 = vunpack.c.l.b16 %v678
          %v711 = vunpack.c.l.b16 %v679
          %v712 = vunpack.c.l.b16 %v680
          %v713 = vunpack.c.l.b16 %v681
          %v714 = vunpack.c.l.b16 %v682
          %v715 = vunpack.c.l.b16 %v683
          %v716 = vunpack.c.l.b16 %v684
          %v717 = vunpack.c.l.b16 %v685
          %v718 = vunpack.c.l.b16 %v686
          %v719 = vunpack.c.l.b16 %v687
          %v720 = vunpack.c.l.b16 %v688
          %v721 = vunpack.c.l.b16 %v689
          %v722 = vunpack.c.l.b16 %v690
          %v723 = vpack.c.b16 %v708, %v707
          %v724 = vpack.c.b16 %v710, %v709
          %v725 = vpack.c.b16 %v712, %v711
          %v726 = vpack.c.b16 %v714, %v713
          %v727 = vpack.c.b16 %v716, %v715
          %v728 = vpack.c.b16 %v718, %v717
          %v729 = vpack.c.b16 %v720, %v719
          %v730 = vpack.c.b16 %v722, %v721
          %739 = vmatprep.subr.bf16.mxu0 0
          %740 = vmatpush1.bf16.msra.mxu0 %v730
          %741 = vmatprep.subr.bf16.mxu0 0
          %742 = vmatpush1.bf16.msra.mxu0 %v729
          %743 = vmatprep.subr.bf16.mxu0 0
          %744 = vmatpush1.bf16.msra.mxu0 %v728
          %745 = vmatprep.subr.bf16.mxu0 0
          %746 = vmatpush1.bf16.msra.mxu0 %v727
          %747 = vmatprep.subr.bf16.mxu0 0
          %748 = vmatpush1.bf16.msra.mxu0 %v726
          %749 = vmatprep.subr.bf16.mxu0 0
          %750 = vmatpush1.bf16.msra.mxu0 %v725
          %751 = vmatprep.subr.bf16.mxu0 0
          %752 = vmatpush1.bf16.msra.mxu0 %v724
          %753 = vmatprep.subr.bf16.mxu0 0
          %754 = vmatpush1.bf16.msra.mxu0 %v723
          %755 = vmatprep.subr.bf16.mxu0 0
          %756 = vmatpush2.bf16.msra.mxu0 0
          %757 = vmatprep.subr.bf16.mxu0 0
          %758 = vmatpush2.bf16.msra.mxu0 0
          %759 = vmatprep.subr.bf16.mxu0 0
          %760 = vmatpush2.bf16.msra.mxu0 0
          %761 = vmatprep.subr.bf16.mxu0 0
          %762 = vmatpush2.bf16.msra.mxu0 0
          %763 = vmatprep.subr.bf16.mxu0 0
          %764 = vmatpush2.bf16.msra.mxu0 0
          %765 = vmatprep.subr.bf16.mxu0 0
          %766 = vmatpush2.bf16.msra.mxu0 0
          %767 = vmatprep.subr.bf16.mxu0 0
          %768 = vmatpush2.bf16.msra.mxu0 0
          %769 = vmatprep.subr.bf16.mxu0 0
          %770 = vmatpush2.bf16.msra.mxu0 0
          %771 = vmatprep.mubr.bf16.mxu0 0
          %772 = vmatmul.mubr.bf16.gmra.mxu0 %v674
          %v773 = vpop.f32.mrf.mxu0
          %v774 = vadd.f32 0.0, %v773
          %v775 = vpop.f32.mrf.mxu0
          %v776 = vpop.f32.mrf.mxu0
          %v777 = vadd.f32 0.0, %v776
          %v778 = vpop.f32.mrf.mxu0
          %779 = vdwg.mxu0
          %v780 = vrsqrt.pop %v672
          %v781 = vrsqrt.pop %v673
          %s782 = sld [smem:[#allocation3]]
          %v783 = vstv %s782
          %v784 = vmul.f32 %v783, 1.442695
          %v785 = vpow.pop %v784
          %s786 = vtos %v785
          %v787 = vstv %s786
          %v788 = vmul.f32 %v780, %v787
          %v789 = vmul.f32 %v781, %v787
          %v790 = vmul.f32 %v774, %v788
          %v791 = vmul.f32 %v777, %v789
          %792 = vst [vmem:[#allocation10] sm:$0xff] %v790
          %793 = vst [vmem:[#allocation10 + $0x8] sm:$0xff] %v791
        $region56: #{tpu_custom_call.1} parent=35 // pred_fallthru
          _
        // Predicated region
        $region57: #{tpu_custom_call.1} parent=35 // pred_check
          %p794 = pneg %p149
        $region58: #{tpu_custom_call.1} parent=35 // pred_check_branch
          %796 = sbr.rel (%p794) target = $region60
        $region59: #{tpu_custom_call.1} parent=35 // pred_region
          %s797 = smul.u32 2, %s27
          %s799 = ssub.s32 256, 256
          %800 = vsyncadd [#allocation6], %s799
          %s801 = smul.addr %s797, 128
          %s802 = scalar_lea.hbm %s4, %s801
          %s803 = sshll.u32 [#allocation10], 4
          %s804 = int_to_ptr.vmem [resolvable:$true] %s803
          %809 = dma.vmem_to_hbm [thread:$0]  %s804, 256, %s802, [#allocation6], 128, 128, 8
        $region60: #{tpu_custom_call.1} parent=35 // pred_fallthru
          _
        // Predicated region
        $region61: #{tpu_custom_call.1} parent=35 // pred_check
          %p810 = pneg %p149
        $region62: #{tpu_custom_call.1} parent=35 // pred_check_branch
          %812 = sbr.rel (%p810) target = $region64
        $region63: #{tpu_custom_call.1} parent=35 // pred_region
          %813 = dma.done [#allocation6], 256
        $region64: #{tpu_custom_call.1} parent=35 // pred_fallthru
          _
      $region36: #{tpu_custom_call.1} parent=5 // pred_fallthru
        _
      %p814 = scmp.le.s32.totalorder 2, %s18
      // Predicated region
      $region65: #{tpu_custom_call.1} parent=5 // pred_check
        %p815 = pneg %p814
      $region66: #{tpu_custom_call.1} parent=5 // pred_check_branch
        %817 = sbr.rel (%p815) target = $region68
      $region67: #{tpu_custom_call.1} parent=5 // pred_region
        %s818 = ssub.s32 %s18, 2
      $region68: #{tpu_custom_call.1} parent=5 // pred_fallthru
        _
    $region6: #{tpu_custom_call.1} parent=1 // loop_footer
      %s22 = sadd.s32 1, %s18
    $region7: #{tpu_custom_call.1} parent=1 // loop_footer_branch
      %17 = sbr.rel target = $region3
    $region8: #{tpu_custom_call.1} parent=1 // loop_exit
      _
    %819 = vsyncpa [#allocation5], 1
    %s820 = scalar_lea.sflag [#allocation5], 1
    %821 = vsyncpa %s820, 1
    %822 = vsyncpa [#allocation8], 1
    %s823 = scalar_lea.sflag [#allocation8], 1
    %824 = vsyncpa %s823, 1
    %825 = vsyncpa [#allocation6], 1
    %s826 = scalar_lea.sflag [#allocation6], 1
    %827 = vsyncpa %s826, 1

</llo_original>
